<compile_context>
chip_gen: v6e
topology: v6e:2x2x1
jax: 0.10.0
libtpu: 0.0.40
codegen_flags: <defaults>
</compile_context>

<pallas_src>
import functools
import math

import jax
import jax.numpy as jnp
import numpy as np
from jax import lax
from jax.experimental import pallas as pl
from jax.experimental.pallas import tpu as pltpu


# Finite "minus infinity" so the online softmax never produces exp(nan).
_MASK_VALUE = -0.7 * float(np.finfo(np.float32).max)
_MIB = 1024 * 1024


def _tpu_kind():
    try:
        dev = jax.devices()[0]
        if dev.platform != "tpu":
            return ""
        return dev.device_kind.lower()
    except Exception:  # pragma: no cover - no backend at all
        return ""


def _hw_config():
    """Generation-dependent tiles / VMEM budget (review items for v5e/v6e/v7x)."""
    kind = _tpu_kind()
    if "v6" in kind:
        # 2x256^2 MXU, 128 MiB VMEM -> 256-wide flash tiles, 512 GEMM blocks.
        return dict(flash_tile=256, gemm_tiles=(512, 512, 512), vmem=96 * _MIB)
    if "v7" in kind or "7x" in kind:
        # Only 64 MiB VMEM per TensorCore -> leave headroom for double buffers.
        return dict(flash_tile=256, gemm_tiles=(512, 512, 512), vmem=48 * _MIB)
    if "v5" in kind:
        # 4x128^2 MXU -> 256-wide attention tiles buy nothing; keep 128.
        return dict(flash_tile=128, gemm_tiles=(512, 512, 512), vmem=96 * _MIB)
    # Unknown device / CPU interpret fallback: conservative.
    return dict(flash_tile=128, gemm_tiles=(256, 256, 512), vmem=64 * _MIB)


def _pick_tile(dim, preferred):
    """Largest 'nice' tile that divides dim; falls back to the full dim."""
    for t in (preferred, 512, 256, 128):
        if t <= dim and dim % t == 0:
            return t
    return dim
    # TODO(synk): shapes with no nice divisor fall back to a full-dim block;
    # pad/mask a ragged tail block if such shapes ever show up at large sizes.


# ----------------------------------------------------------------------------
# Generic K-accumulated GEMM kernel (used by both projection GEMMs)
# ----------------------------------------------------------------------------
def _matmul_acc_kernel(x_ref, w_ref, o_ref, acc_ref, *, acc_axis):
    # Grid-position scalars are read at the top level only.
    k = pl.program_id(acc_axis)
    nk = pl.num_programs(acc_axis)

    @pl.when(k == 0)
    def _():
        acc_ref[...] = jnp.zeros_like(acc_ref)

    acc_ref[...] += jnp.dot(x_ref[...], w_ref[...],
                            preferred_element_type=jnp.float32)

    @pl.when(k == nk - 1)
    def _():
        o_ref[...] = acc_ref[...].astype(o_ref.dtype)


def pallas_matmul(x, w, *, tm=256, tn=256, tk=512, vmem_limit=64 * _MIB):
    """x: (M, K), w: (K, N) -> (M, N). Tiled, pipelined MXU matmul."""
    M, K = x.shape
    K2, N = w.shape
    assert K == K2
    bm, bn, bk = _pick_tile(M, tm), _pick_tile(N, tn), _pick_tile(K, tk)
    grid = (M // bm, N // bn, K // bk)
    cost = pl.CostEstimate(
        flops=2 * M * N * K,
        transcendentals=0,
        bytes_accessed=(M * K + K * N + M * N) * x.dtype.itemsize)
    return pl.pallas_call(
        functools.partial(_matmul_acc_kernel, acc_axis=2),
        out_shape=jax.ShapeDtypeStruct((M, N), x.dtype),
        grid_spec=pltpu.PrefetchScalarGridSpec(
            num_scalar_prefetch=0,
            grid=grid,
            in_specs=[pl.BlockSpec((bm, bk), lambda i, j, k: (i, k)),
                      pl.BlockSpec((bk, bn), lambda i, j, k: (k, j))],
            out_specs=pl.BlockSpec((bm, bn), lambda i, j, k: (i, j)),
            scratch_shapes=[pltpu.VMEM((bm, bn), jnp.float32)]),
        compiler_params=pltpu.CompilerParams(
            dimension_semantics=("parallel", "parallel", "arbitrary"),
            vmem_limit_bytes=vmem_limit),
        cost_estimate=cost,
    )(x, w)


# ----------------------------------------------------------------------------
# RoPE + head-major relayout (one pass, outside the attention inner loop)
# ----------------------------------------------------------------------------
def _rotate_half(x):
    half = x.shape[-1] // 2
    return jnp.concatenate([-x[..., half:], x[..., :half]], axis=-1)


def _rope_relayout_kernel(q_ref, k_ref, v_ref, cos_ref, sin_ref,
                          qo_ref, ko_ref, vo_ref):
    # q/k/v refs: (bs, H, D) slices of the fused QKV activation.
    # Outputs: head-major (H, bs, D) so the flash kernel gets contiguous
    # per-head blocks (relayout done ONCE here, not per kv step).
    cos = cos_ref[...][:, None, :].astype(jnp.float32)
    sin = sin_ref[...][:, None, :].astype(jnp.float32)

    # RoPE in f32 like the torch reference (.float() ... .type_as()).  The
    # weights were pre-permuted (evens|odds per head) so this lane-contiguous
    # rotate-half matches the interleaved torch convention exactly.
    qf = q_ref[...].astype(jnp.float32)
    kf = k_ref[...].astype(jnp.float32)
    q_rot = qf * cos + _rotate_half(qf) * sin
    k_rot = kf * cos + _rotate_half(kf) * sin

    qo_ref[...] = jnp.transpose(q_rot, (1, 0, 2)).astype(qo_ref.dtype)
    ko_ref[...] = jnp.transpose(k_rot, (1, 0, 2)).astype(ko_ref.dtype)
    vo_ref[...] = jnp.transpose(v_ref[...], (1, 0, 2))


def pallas_rope_relayout(xqkv, cos_full, sin_full, *, vmem_limit=64 * _MIB):
    """xqkv: (B, S, 3, H, D) -> q_hm, k_hm, v_hm each (B, H, S, D)."""
    B, S, three, H, D = xqkv.shape
    assert three == 3
    itemsize = xqkv.dtype.itemsize
    bs = S
    for t in (512, 256, 128, 64, 32, 16, 8):
        # ~12 live buffers of (t, H, D); keep the pass well inside VMEM.
        if t <= S and S % t == 0 and 12 * t * H * D * itemsize <= 24 * _MIB:
            bs = t
            break
    grid = (B, S // bs)
    out_sds = jax.ShapeDtypeStruct((B, H, S, D), xqkv.dtype)
    return pl.pallas_call(
        _rope_relayout_kernel,
        out_shape=(out_sds, out_sds, out_sds),
        grid_spec=pltpu.PrefetchScalarGridSpec(
            num_scalar_prefetch=0,
            grid=grid,
            in_specs=[
                pl.BlockSpec((None, bs, None, H, D),
                             lambda b, si: (b, si, 0, 0, 0)),   # q slice
                pl.BlockSpec((None, bs, None, H, D),
                             lambda b, si: (b, si, 1, 0, 0)),   # k slice
                pl.BlockSpec((None, bs, None, H, D),
                             lambda b, si: (b, si, 2, 0, 0)),   # v slice
                pl.BlockSpec((bs, D), lambda b, si: (si, 0)),   # cos
                pl.BlockSpec((bs, D), lambda b, si: (si, 0)),   # sin
            ],
            out_specs=[
                pl.BlockSpec((None, H, bs, D), lambda b, si: (b, 0, si, 0)),
                pl.BlockSpec((None, H, bs, D), lambda b, si: (b, 0, si, 0)),
                pl.BlockSpec((None, H, bs, D), lambda b, si: (b, 0, si, 0)),
            ]),
        compiler_params=pltpu.CompilerParams(
            dimension_semantics=("parallel", "parallel"),
            vmem_limit_bytes=vmem_limit),
    )(xqkv, xqkv, xqkv, cos_full, sin_full)


# ----------------------------------------------------------------------------
# Flash attention: one head per grid step, online softmax, in-kernel mask
# ----------------------------------------------------------------------------
def _flash_attn_kernel(q_ref, k_ref, v_ref, o_ref, m_scr, l_scr, acc_scr, *,
                       start_pos, causal):
    # q_ref: (bq, D); k_ref / v_ref: (bk, D); o_ref: (bq, D).
    # IMPORTANT: every pl.program_id / pl.num_programs read is here at the top
    # level of the kernel body (never inside a pl.when body).
    qi = pl.program_id(2)
    ki = pl.program_id(3)
    nk = pl.num_programs(3)
    bq = q_ref.shape[0]
    bk = k_ref.shape[0]
    q_start = qi * bq + start_pos      # shifted query position of row 0
    k_start = ki * bk                  # key position of column 0

    @pl.when(ki == 0)
    def _():
        m_scr[...] = jnp.full_like(m_scr, -jnp.inf)
        l_scr[...] = jnp.zeros_like(l_scr)
        acc_scr[...] = jnp.zeros_like(acc_scr)

    def _update():
        # scores = q @ k^T; 1/sqrt(head_dim) is folded into Wq outside.
        s = lax.dot_general(q_ref[...], k_ref[...],
                            (((1,), (1,)), ((), ())),
                            preferred_element_type=jnp.float32)   # (bq, bk)
        if causal:
            q_pos = q_start + lax.broadcasted_iota(jnp.int32, (bq, bk), 0)
            k_pos = k_start + lax.broadcasted_iota(jnp.int32, (bq, bk), 1)
            s = jnp.where(k_pos <= q_pos, s, _MASK_VALUE)

        m_prev = m_scr[...]
        m_new = jnp.maximum(m_prev, jnp.max(s, axis=-1, keepdims=True))
        alpha = jnp.exp(m_prev - m_new)
        p = jnp.exp(s - m_new)
        l_scr[...] = alpha * l_scr[...] + jnp.sum(p, axis=-1, keepdims=True)
        acc_scr[...] = alpha * acc_scr[...] + jnp.dot(
            p.astype(v_ref.dtype), v_ref[...],
            preferred_element_type=jnp.float32)
        m_scr[...] = m_new

    if causal:
        # Skip kv blocks that lie entirely in the masked future of this q block.
        pl.when(k_start <= q_start + (bq - 1))(_update)
    else:
        _update()

    @pl.when(ki == nk - 1)
    def _():
        # TODO(synk): pl.reciprocal(l, approx=True) would route this divide to
        # the EUP, but it lacks a CPU/interpret lowering; keep the plain divide
        # (once per q block) for portability.
        o_ref[...] = (acc_scr[...] / l_scr[...]).astype(o_ref.dtype)


def pallas_flash_attention(q_hm, k_hm, v_hm, *, start_pos=0, causal=True,
                           tq=128, tk=128, vmem_limit=64 * _MIB):
    """q/k/v head-major (B, H, S, D) -> attention output (B, H, S, D)."""
    B, H, S, D = q_hm.shape
    bq, bk = _pick_tile(S, tq), _pick_tile(S, tk)
    grid = (B, H, S // bq, S // bk)
    kernel = functools.partial(_flash_attn_kernel,
                               start_pos=start_pos, causal=causal)
    flops = 4 * B * H * S * S * D
    trans = B * H * S * S
    if causal:        # block-skip removes ~half the work
        flops //= 2
        trans //= 2
    cost = pl.CostEstimate(
        flops=flops, transcendentals=trans,
        bytes_accessed=4 * B * H * S * D * q_hm.dtype.itemsize)
    return pl.pallas_call(
        kernel,
        out_shape=jax.ShapeDtypeStruct((B, H, S, D), q_hm.dtype),
        grid_spec=pltpu.PrefetchScalarGridSpec(
            num_scalar_prefetch=0,
            grid=grid,
            in_specs=[
                pl.BlockSpec((None, None, bq, D),
                             lambda b, h, qi, ki: (b, h, qi, 0)),
                pl.BlockSpec((None, None, bk, D),
                             lambda b, h, qi, ki: (b, h, ki, 0)),
                pl.BlockSpec((None, None, bk, D),
                             lambda b, h, qi, ki: (b, h, ki, 0)),
            ],
            out_specs=pl.BlockSpec((None, None, bq, D),
                                   lambda b, h, qi, ki: (b, h, qi, 0)),
            scratch_shapes=[
                pltpu.VMEM((bq, 1), jnp.float32),   # m (running max)
                pltpu.VMEM((bq, 1), jnp.float32),   # l (running denom)
                pltpu.VMEM((bq, D), jnp.float32),   # acc (unnormalized out)
            ]),
        compiler_params=pltpu.CompilerParams(
            dimension_semantics=("parallel", "parallel", "parallel",
                                 "arbitrary"),
            vmem_limit_bytes=vmem_limit),
        cost_estimate=cost,
    )(q_hm, k_hm, v_hm)


# ----------------------------------------------------------------------------
# Output projection: reduction over the head axis consumes the head-major
# attention output directly (no glue transpose back to (B, S, H*D)).
# ----------------------------------------------------------------------------
def pallas_out_projection(attn_hm, wo_t, *, tm=256, tn=256,
                          vmem_limit=64 * _MIB):
    """attn_hm: (B, H, S, D); wo_t: (H*D, dim) -> (B, S, dim)."""
    B, H, S, D = attn_hm.shape
    HD, dim = wo_t.shape
    assert HD == H * D
    bm = _pick_tile(S, tm)
    bn = _pick_tile(dim, tn)
    grid = (B, S // bm, dim // bn, H)
    cost = pl.CostEstimate(
        flops=2 * B * S * H * D * dim,
        transcendentals=0,
        bytes_accessed=(B * H * S * D + HD * dim + B * S * dim)
        * attn_hm.dtype.itemsize)
    return pl.pallas_call(
        functools.partial(_matmul_acc_kernel, acc_axis=3),
        out_shape=jax.ShapeDtypeStruct((B, S, dim), attn_hm.dtype),
        grid_spec=pltpu.PrefetchScalarGridSpec(
            num_scalar_prefetch=0,
            grid=grid,
            in_specs=[
                pl.BlockSpec((None, None, bm, D),
                             lambda b, mi, nj, h: (b, h, mi, 0)),
                pl.BlockSpec((D, bn), lambda b, mi, nj, h: (h, nj)),
            ],
            out_specs=pl.BlockSpec((None, bm, bn),
                                   lambda b, mi, nj, h: (b, mi, nj)),
            scratch_shapes=[pltpu.VMEM((bm, bn), jnp.float32)]),
        compiler_params=pltpu.CompilerParams(
            dimension_semantics=("parallel", "parallel", "parallel",
                                 "arbitrary"),
            vmem_limit_bytes=vmem_limit),
        cost_estimate=cost,
    )(attn_hm, wo_t)


# ----------------------------------------------------------------------------
# One-time parameter preparation (outside the per-step hot path)
# ----------------------------------------------------------------------------
def prepare_attention_params(wq, wk, wv, wo, n_heads, head_dim):
    """Fuse Wq/Wk/Wv into one (dim, 3*dim) matrix (x @ W^T baked in), permute
    each head's q/k output features from interleaved pairs to [evens | odds]
    so RoPE becomes a lane-contiguous rotate-half (same permutation on q and k
    => q.k over head_dim, and hence the output, is unchanged), fold the
    1/sqrt(head_dim) score scale into Wq (RoPE is a rotation, scale commutes),
    and pre-transpose Wo.  NOTE: exact in f32; with bf16 weights the fold only
    changes rounding."""
    scale = 1.0 / math.sqrt(head_dim)
    perm = np.concatenate([
        h * head_dim + np.concatenate([np.arange(0, head_dim, 2),
                                       np.arange(1, head_dim, 2)])
        for h in range(n_heads)]).astype(np.int32)
    perm = jnp.asarray(perm)
    w_qkv = jnp.concatenate([wq[perm, :] * scale, wk[perm, :], wv], axis=0).T
    wo_t = wo.T
    return w_qkv, wo_t


# ----------------------------------------------------------------------------
# Attention module forward (Pallas-backed)
# ----------------------------------------------------------------------------
def attention_forward(x, w_qkv, wo_t, cos, sin, n_heads, head_dim, *,
                      start_pos=0, causal=True):
    """x: (B, S, dim); cos/sin: (S, head_dim // 2) from the LLaMA freqs_cis."""
    B, S, dim = x.shape
    cfg = _hw_config()
    tm, tn, tk = cfg["gemm_tiles"]
    vmem = cfg["vmem"]
    ft = cfg["flash_tile"]

    # 1) Fused QKV projection: one tiled GEMM, x read from HBM once.
    xqkv = pallas_matmul(x.reshape(B * S, dim), w_qkv,
                         tm=tm, tn=tn, tk=tk, vmem_limit=vmem)  # (B*S, 3*dim)
    xqkv = xqkv.reshape(B, S, 3, n_heads, head_dim)             # free reshape

    # 2) RoPE + head-major relayout, once per element.
    cos_full = jnp.concatenate([cos, cos], axis=-1)             # (S, head_dim)
    sin_full = jnp.concatenate([sin, sin], axis=-1)
    q_hm, k_hm, v_hm = pallas_rope_relayout(xqkv, cos_full, sin_full,
                                            vmem_limit=vmem)

    # 3) Flash attention, one head per grid step.
    attn_hm = pallas_flash_attention(q_hm, k_hm, v_hm, start_pos=start_pos,
                                     causal=causal, tq=ft, tk=ft,
                                     vmem_limit=vmem)

    # 4) Output projection (head axis = reduction axis).
    return pallas_out_projection(attn_hm, wo_t, tm=tm, tn=tn, vmem_limit=vmem)
    # TODO(synk): no KV cache path (the reference module recomputes the full
    # window too); not a drop-in for cached decode.


# ----------------------------------------------------------------------------
# Pure-JAX reference mirroring the PyTorch module (for correctness check)
# ----------------------------------------------------------------------------
def _apply_rotary_emb_ref(xq, xk, cos, sin):
    def rot(x):
        xr, xi = x[..., 0::2], x[..., 1::2]
        c = cos[None, :, None, :]
        s = sin[None, :, None, :]
        return jnp.stack([xr * c - xi * s, xr * s + xi * c],
                         axis=-1).reshape(x.shape)
    return rot(xq), rot(xk)


def attention_reference(x, wq, wk, wv, wo, cos, sin, mask, n_heads, head_dim):
    B, S, dim = x.shape
    xq = (x @ wq.T).reshape(B, S, n_heads, head_dim)
    xk = (x @ wk.T).reshape(B, S, n_heads, head_dim)
    xv = (x @ wv.T).reshape(B, S, n_heads, head_dim)
    xq, xk = _apply_rotary_emb_ref(xq, xk, cos, sin)
    q = jnp.transpose(xq, (0, 2, 1, 3))
    k = jnp.transpose(xk, (0, 2, 1, 3))
    v = jnp.transpose(xv, (0, 2, 1, 3))
    scores = jnp.einsum("bhqd,bhkd->bhqk", q, k) / math.sqrt(head_dim) + mask
    p = jax.nn.softmax(scores.astype(jnp.float32), axis=-1)
    out = jnp.einsum("bhqk,bhkd->bhqd", p, v)
    out = jnp.transpose(out, (0, 2, 1, 3)).reshape(B, S, n_heads * head_dim)
    return out @ wo.T


if __name__ == "__main__":
    # Small shapes consistent with the module: dim=32, n_heads=4 -> head_dim=8
    B, S, dim, n_heads = 2, 8, 32, 4
    head_dim = dim // n_heads
    start_pos = 0

    key = jax.random.PRNGKey(0)
    kq, kk, kv, ko, kx = jax.random.split(key, 5)
    # torch Linear weights are (out_features, in_features)
    wq = jax.random.normal(kq, (dim, dim), jnp.float32) * 0.02
    wk = jax.random.normal(kk, (dim, dim), jnp.float32) * 0.02
    wv = jax.random.normal(kv, (dim, dim), jnp.float32) * 0.02
    wo = jax.random.normal(ko, (dim, dim), jnp.float32) * 0.02
    x = jax.random.normal(kx, (B, S, dim), jnp.float32)

    # freqs_cis (LLaMA precompute) as cos/sin of shape (S, head_dim // 2)
    theta = 10000.0
    freqs = 1.0 / (theta ** (jnp.arange(0, head_dim, 2, dtype=jnp.float32)
                             / head_dim))
    t = jnp.arange(S, dtype=jnp.float32)
    angles = jnp.outer(t, freqs)
    cos, sin = jnp.cos(angles), jnp.sin(angles)

    # One-time weight prep (fused QKV, RoPE permutation, scale fold, Wo^T)
    w_qkv, wo_t = prepare_attention_params(wq, wk, wv, wo, n_heads, head_dim)

    out = attention_forward(x, w_qkv, wo_t, cos, sin, n_heads, head_dim,
                            start_pos=start_pos, causal=True)
    out = jax.block_until_ready(out)

    # Reference uses the original weights / interleaved RoPE / explicit mask,
    # matching the PyTorch module exactly.
    mask = jnp.triu(jnp.full((1, 1, S, S), float("-inf"), dtype=jnp.float32),
                    k=start_pos + 1)
    ref = attention_reference(x, wq, wk, wv, wo, cos, sin, mask,
                              n_heads, head_dim)
    np.testing.assert_allclose(np.asarray(out), np.asarray(ref),
                               rtol=2e-2, atol=2e-3)

    print("KERNEL_OK")
</pallas_src>

<mosaic_0001>
module attributes {stable_mosaic.version = 11 : i64} {
  func.func @_matmul_acc_kernel(%arg0: i32, %arg1: i32, %arg2: i32, %arg3: memref<16x32xf32, #tpu.memory_space<vmem>>, %arg4: memref<32x96xf32, #tpu.memory_space<vmem>>, %arg5: memref<16x96xf32, #tpu.memory_space<vmem>>, %arg6: memref<16x96xf32, #tpu.memory_space<vmem>>) attributes {dimension_semantics = [#tpu.dimension_semantics<parallel>, #tpu.dimension_semantics<parallel>, #tpu.dimension_semantics<arbitrary>], iteration_bounds = array<i64: 1, 1, 1>, scalar_prefetch = 0 : i64, scratch_operands = 1 : i64, tpu.core_type = #tpu.core_type<tc>, window_params = [{transform_indices = @transform_0, window_bounds = array<i64: 16, 32>}, {transform_indices = @transform_1, window_bounds = array<i64: 32, 96>}, {transform_indices = @transform_2, window_bounds = array<i64: 16, 96>}]} {
    %c0_i32 = arith.constant 0 : i32
    %0 = arith.cmpi eq, %arg2, %c0_i32 : i32
    %1 = arith.extui %0 : i1 to i32
    %c0_i32_0 = arith.constant 0 : i32
    %2 = arith.cmpi ne, %1, %c0_i32_0 : i32
    scf.if %2 {
      %cst_10 = arith.constant 0.000000e+00 : f32
      %12 = vector.broadcast %cst_10 : f32 to vector<16x96xf32>
      %c0_11 = arith.constant 0 : index
      %c0_12 = arith.constant 0 : index
      %13 = vector.load %arg6[%c0_11, %c0_12] : memref<16x96xf32, #tpu.memory_space<vmem>>, vector<16x96xf32>
      tpu.vector_store %arg6[%c0_11, %c0_12], %12 {strides = array<i32>} : memref<16x96xf32, #tpu.memory_space<vmem>>, vector<16x96xf32>,
    } else {
    }
    %c0 = arith.constant 0 : index
    %c0_1 = arith.constant 0 : index
    %3 = vector.load %arg6[%c0, %c0_1] : memref<16x96xf32, #tpu.memory_space<vmem>>, vector<16x96xf32>
    %c0_2 = arith.constant 0 : index
    %c0_3 = arith.constant 0 : index
    %4 = vector.load %arg3[%c0_2, %c0_3] : memref<16x32xf32, #tpu.memory_space<vmem>>, vector<16x32xf32>
    %c0_4 = arith.constant 0 : index
    %c0_5 = arith.constant 0 : index
    %5 = vector.load %arg4[%c0_4, %c0_5] : memref<32x96xf32, #tpu.memory_space<vmem>>, vector<32x96xf32>
    %cst = arith.constant dense<0.000000e+00> : vector<16x96xf32>
    %6 = tpu.matmul %4, %5, %cst {dimension_numbers = #tpu.dot_dimension_numbers<[1], [0], [0], [1], [0, 0, 1, 1], [], []>} : vector<16x32xf32>, vector<32x96xf32>, vector<16x96xf32> -> vector<16x96xf32>
    %7 = arith.addf %3, %6 : vector<16x96xf32>
    %c0_6 = arith.constant 0 : index
    %c0_7 = arith.constant 0 : index
    %8 = vector.load %arg6[%c0_6, %c0_7] : memref<16x96xf32, #tpu.memory_space<vmem>>, vector<16x96xf32>
    tpu.vector_store %arg6[%c0_6, %c0_7], %7 {strides = array<i32>} : memref<16x96xf32, #tpu.memory_space<vmem>>, vector<16x96xf32>,
    %c0_i32_8 = arith.constant 0 : i32
    %9 = arith.cmpi eq, %arg2, %c0_i32_8 : i32
    %10 = arith.extui %9 : i1 to i32
    %c0_i32_9 = arith.constant 0 : i32
    %11 = arith.cmpi ne, %10, %c0_i32_9 : i32
    scf.if %11 {
      %c0_10 = arith.constant 0 : index
      %c0_11 = arith.constant 0 : index
      %12 = vector.load %arg6[%c0_10, %c0_11] : memref<16x96xf32, #tpu.memory_space<vmem>>, vector<16x96xf32>
      %c0_12 = arith.constant 0 : index
      %c0_13 = arith.constant 0 : index
      %13 = vector.load %arg5[%c0_12, %c0_13] : memref<16x96xf32, #tpu.memory_space<vmem>>, vector<16x96xf32>
      tpu.vector_store %arg5[%c0_12, %c0_13], %12 {strides = array<i32>} : memref<16x96xf32, #tpu.memory_space<vmem>>, vector<16x96xf32>,
    } else {
    }
    return
  }
  func.func @transform_0(%arg0: i32, %arg1: i32, %arg2: i32) -> (i32, i32) {
    %c0_i32 = arith.constant 0 : i32
    return %arg0, %arg2 : i32, i32
  }
  func.func @transform_1(%arg0: i32, %arg1: i32, %arg2: i32) -> (i32, i32) {
    %c0_i32 = arith.constant 0 : i32
    return %arg2, %arg1 : i32, i32
  }
  func.func @transform_2(%arg0: i32, %arg1: i32, %arg2: i32) -> (i32, i32) {
    %c0_i32 = arith.constant 0 : i32
    return %arg0, %arg1 : i32, i32
  }
}

</mosaic_0001>

<llo_original>
// kernel: tpu_custom_call.1
$region0: #{tpu_custom_call.1}
  #allocation0 [shape = 'u32[]', space=smem, size = 0x4, offset = 0x4, fixed_abs, tag = 'smem constant byte address 0x4 - core index']
  #allocation1 [shape = 'u32[144,128]{1,0:T(1,128)}', space=vmem, size = 0x12000, scoped, tag = 'internal scratch']
  #allocation2 [shape = 'f32[16,96]{1,0:T(8,128)}', space=vmem, size = 0x2000, scoped, tag = 'scratch operand']
  %s0 = inlined_call_operand.hbm [shape: f32[16,32], index: 0, kind: input, shape index: {}]
  %s1 = inlined_call_operand.hbm [shape: f32[32,96], index: 1, kind: input, shape index: {}]
  %s2 = inlined_call_operand.hbm [shape: f32[16,96], index: 2, kind: output, shape index: {}]
  %s3 = sld [smem:[#allocation0]]
  $region34: #{tpu_custom_call.1} parent=0
    _
  %s5 = ssub.s32 1, %s3
  %s6 = scalar_select 0, %s5, %s3
  $region1: #{tpu_custom_call.1} parent=0
    #allocation3 [shape = 'u8[8192]{0}', space=vmem, size = 0x2000, scoped, tag = 'input window, operand 0, single buffered']
    #allocation4 [shape = 's32[1]{0}', space=sflag, size = 0x4, scoped, tag = 'scoped memory for tpu_custom_call.1']
    #allocation5 [shape = 's32[1]{0}', space=sflag, size = 0x4, scoped, tag = 'scoped memory for tpu_custom_call.1']
    #allocation6 [shape = 'u8[16384]{0}', space=vmem, size = 0x4000, scoped, tag = 'input window, operand 1, single buffered']
    #allocation7 [shape = 's32[1]{0}', space=sflag, size = 0x4, scoped, tag = 'scoped memory for tpu_custom_call.1']
    #allocation8 [shape = 'u8[8192]{0}', space=vmem, size = 0x2000, scoped, tag = 'output window, operand 0, single buffered']
    %7 = vsyncpa [#allocation4], 0
    %8 = vsyncpa [#allocation7], 0
    %9 = vsyncpa [#allocation5], 0
    // Predicated region
    $region2: #{tpu_custom_call.1} parent=1 // pred_check
      _
    $region3: #{tpu_custom_call.1} parent=1 // pred_check_branch
      %11 = sbr.rel (0) target = $region5
    $region4: #{tpu_custom_call.1} parent=1 // pred_region
      %s13 = ssub.s32 256, 256
      %14 = vsyncadd [#allocation4], %s13
      %s15 = sshll.u32 [#allocation3], 4
      %s16 = int_to_ptr.vmem [resolvable:$true] %s15
      %21 = dma.hbm_to_vmem [thread:$0]  %s0, 256, %s16, [#allocation4], 128, 128, 8
    $region5: #{tpu_custom_call.1} parent=1 // pred_fallthru
      _
    // Predicated region
    $region6: #{tpu_custom_call.1} parent=1 // pred_check
      _
    $region7: #{tpu_custom_call.1} parent=1 // pred_check_branch
      %23 = sbr.rel (0) target = $region9
    $region8: #{tpu_custom_call.1} parent=1 // pred_region
      %s25 = ssub.s32 512, 512
      %26 = vsyncadd [#allocation7], %s25
      %s27 = sshll.u32 [#allocation6], 4
      %s28 = int_to_ptr.vmem [resolvable:$true] %s27
      %33 = dma.hbm_to_vmem [thread:$0]  %s1, 512, %s28, [#allocation7], 128, 128, 8
    $region9: #{tpu_custom_call.1} parent=1 // pred_fallthru
      _
    // Predicated region
    $region10: #{tpu_custom_call.1} parent=1 // pred_check
      _
    $region11: #{tpu_custom_call.1} parent=1 // pred_check_branch
      %35 = sbr.rel (0) target = $region13
    $region12: #{tpu_custom_call.1} parent=1 // pred_region
      %36 = dma.done [#allocation4], 256
    $region13: #{tpu_custom_call.1} parent=1 // pred_fallthru
      _
    // Predicated region
    $region14: #{tpu_custom_call.1} parent=1 // pred_check
      _
    $region15: #{tpu_custom_call.1} parent=1 // pred_check_branch
      %38 = sbr.rel (0) target = $region17
    $region16: #{tpu_custom_call.1} parent=1 // pred_region
      %39 = dma.done [#allocation7], 512
    $region17: #{tpu_custom_call.1} parent=1 // pred_fallthru
      _
    %p40 = scmp.eq.s32.totalorder 0, 0
    // Predicated region
    $region18: #{tpu_custom_call.1} parent=1 // pred_check
      %p41 = pneg %p40
    $region19: #{tpu_custom_call.1} parent=1 // pred_check_branch
      %43 = sbr.rel (%p41) target = $region21
    $region20: #{tpu_custom_call.1} parent=1 // pred_region
      %vm44 = vcmask 785408
      %45 = vst.msk [vmem:[#allocation2] sm:$0xff] %vm44, 0.0
      %46 = vst.msk [vmem:[#allocation2 + $0x8] sm:$0xff] %vm44, 0.0
    $region21: #{tpu_custom_call.1} parent=1 // pred_fallthru
      _
    %v47 = vld [vmem:[#allocation2] sm:$0xff]
    %v48 = vld [vmem:[#allocation2 + $0x8] sm:$0xff]
    %v49 = vld [vmem:[#allocation3] sm:$0xff]
    %v50 = vld [vmem:[#allocation3 + $0x8] sm:$0xff]
    %v51 = vld [vmem:[#allocation6] sm:$0xff]
    %v52 = vld [vmem:[#allocation6 + $0x8] sm:$0xff]
    %v53 = vld [vmem:[#allocation6 + $0x10] sm:$0xff]
    %v54 = vld [vmem:[#allocation6 + $0x18] sm:$0xff]
    %vm55 = vcmask 261120
    %v57 = vsel %vm55, %v49, 0
    %v60 = vsel %vm55, %v50, 0
    %62 = vmatprep.subr.mxu0 0.0
    %63 = vmatpush1.msra.mxu0 0.0
    %64 = vmatprep.subr.mxu0 0.0
    %65 = vmatpush1.msra.mxu0 0.0
    %66 = vmatprep.subr.mxu0 0.0
    %67 = vmatpush1.msra.mxu0 0.0
    %68 = vmatprep.subr.mxu0 0.0
    %69 = vmatpush1.msra.mxu0 0.0
    %70 = vmatprep.subr.mxu0 0.0
    %71 = vmatpush1.msra.mxu0 0.0
    %72 = vmatprep.subr.mxu0 0.0
    %73 = vmatpush1.msra.mxu0 0.0
    %74 = vmatprep.subr.mxu0 0.0
    %75 = vmatpush1.msra.mxu0 0.0
    %76 = vmatprep.subr.mxu0 0.0
    %77 = vmatpush1.msra.mxu0 0.0
    %78 = vmatprep.subr.mxu0 0.0
    %79 = vmatpush1.msra.mxu0 0.0
    %80 = vmatprep.subr.mxu0 0.0
    %81 = vmatpush1.msra.mxu0 0.0
    %82 = vmatprep.subr.mxu0 0.0
    %83 = vmatpush1.msra.mxu0 0.0
    %84 = vmatprep.subr.mxu0 0.0
    %85 = vmatpush1.msra.mxu0 0.0
    %86 = vmatprep.subr.mxu0 0.0
    %87 = vmatpush1.msra.mxu0 %v54
    %88 = vmatprep.subr.mxu0 0.0
    %89 = vmatpush1.msra.mxu0 %v53
    %90 = vmatprep.subr.mxu0 0.0
    %91 = vmatpush1.msra.mxu0 %v52
    %92 = vmatprep.subr.mxu0 0.0
    %93 = vmatpush1.msra.mxu0 %v51
    %94 = vmatprep.subr.mxu0 0.0
    %95 = vmatpush2.msra.mxu0 0.0
    %96 = vmatprep.subr.mxu0 0.0
    %97 = vmatpush2.msra.mxu0 0.0
    %98 = vmatprep.subr.mxu0 0.0
    %99 = vmatpush2.msra.mxu0 0.0
    %100 = vmatprep.subr.mxu0 0.0
    %101 = vmatpush2.msra.mxu0 0.0
    %102 = vmatprep.subr.mxu0 0.0
    %103 = vmatpush2.msra.mxu0 0.0
    %104 = vmatprep.subr.mxu0 0.0
    %105 = vmatpush2.msra.mxu0 0.0
    %106 = vmatprep.subr.mxu0 0.0
    %107 = vmatpush2.msra.mxu0 0.0
    %108 = vmatprep.subr.mxu0 0.0
    %109 = vmatpush2.msra.mxu0 0.0
    %110 = vmatprep.subr.mxu0 0.0
    %111 = vmatpush2.msra.mxu0 0.0
    %112 = vmatprep.subr.mxu0 0.0
    %113 = vmatpush2.msra.mxu0 0.0
    %114 = vmatprep.subr.mxu0 0.0
    %115 = vmatpush2.msra.mxu0 0.0
    %116 = vmatprep.subr.mxu0 0.0
    %117 = vmatpush2.msra.mxu0 0.0
    %118 = vmatprep.subr.mxu0 0.0
    %119 = vmatpush2.msra.mxu0 0.0
    %120 = vmatprep.subr.mxu0 0.0
    %121 = vmatpush2.msra.mxu0 0.0
    %122 = vmatprep.subr.mxu0 0.0
    %123 = vmatpush2.msra.mxu0 0.0
    %124 = vmatprep.subr.mxu0 0.0
    %125 = vmatpush2.msra.mxu0 0.0
    %126 = vmatprep.mubr.f32.mxu0 0.0
    %127 = vmatmul.mubr.f32.gmra.mxu0 %v57
    %v128 = vpop.f32.mrf.mxu0
    %v129 = vadd.f32 0.0, %v128
    %v130 = vpop.f32.mrf.mxu0
    %131 = vmatprep.mubr.f32.mxu0 0.0
    %132 = vmatmul.mubr.f32.gmra.mxu0 %v60
    %v133 = vpop.f32.mrf.mxu0
    %v134 = vadd.f32 0.0, %v133
    %v135 = vpop.f32.mrf.mxu0
    %136 = vdwg.mxu0
    %v137 = vadd.f32 %v47, %v129
    %v138 = vadd.f32 %v48, %v134
    %vm139 = vcmask 785408
    %140 = vst.msk [vmem:[#allocation2] sm:$0xff] %vm139, %v137
    %141 = vst.msk [vmem:[#allocation2 + $0x8] sm:$0xff] %vm139, %v138
    // Predicated region
    $region22: #{tpu_custom_call.1} parent=1 // pred_check
      %p142 = pneg %p40
    $region23: #{tpu_custom_call.1} parent=1 // pred_check_branch
      %144 = sbr.rel (%p142) target = $region25
    $region24: #{tpu_custom_call.1} parent=1 // pred_region
      %v145 = vld [vmem:[#allocation2] sm:$0xff]
      %v146 = vld [vmem:[#allocation2 + $0x8] sm:$0xff]
      %147 = vst.msk [vmem:[#allocation8] sm:$0xff] %vm139, %v145
      %148 = vst.msk [vmem:[#allocation8 + $0x8] sm:$0xff] %vm139, %v146
    $region25: #{tpu_custom_call.1} parent=1 // pred_fallthru
      _
    // Predicated region
    $region26: #{tpu_custom_call.1} parent=1 // pred_check
      _
    $region27: #{tpu_custom_call.1} parent=1 // pred_check_branch
      %150 = sbr.rel (0) target = $region29
    $region28: #{tpu_custom_call.1} parent=1 // pred_region
      %s152 = ssub.s32 256, 256
      %153 = vsyncadd [#allocation5], %s152
      %s154 = sshll.u32 [#allocation8], 4
      %s155 = int_to_ptr.vmem [resolvable:$true] %s154
      %160 = dma.vmem_to_hbm [thread:$0]  %s155, 256, %s2, [#allocation5], 128, 128, 8
    $region29: #{tpu_custom_call.1} parent=1 // pred_fallthru
      _
    // Predicated region
    $region30: #{tpu_custom_call.1} parent=1 // pred_check
      _
    $region31: #{tpu_custom_call.1} parent=1 // pred_check_branch
      %162 = sbr.rel (0) target = $region33
    $region32: #{tpu_custom_call.1} parent=1 // pred_region
      %163 = dma.done [#allocation5], 256
    $region33: #{tpu_custom_call.1} parent=1 // pred_fallthru
      _
    %164 = vsyncpa [#allocation4], 1
    %165 = vsyncpa [#allocation7], 1
    %166 = vsyncpa [#allocation5], 1

</llo_original>
